<compile_context>
chip_gen: v6e
topology: v6e:2x2x1
jax: 0.10.0
libtpu: 0.0.40
codegen_flags: <defaults>
</compile_context>

<pallas_src>
import jax
import jax.numpy as jnp
import numpy as np
from jax.experimental import pallas as pl
from jax.experimental.pallas import tpu as pltpu

HEADS = 2
OUT_CH = 35              # GATConv out_channels
NEG_SLOPE = 0.2          # PyG GATConv default LeakyReLU slope
CPAD = 64                # per-head lane padding
HCPAD = HEADS * CPAD     # 128 : lane-dense augmented-projection / output width
# Attention-logit columns live in head 0's unused padding lanes [35, 64); any
# placement inside the single 128-lane tile is layout-equivalent, and keeping
# them adjacent lets the kernel slice + transpose them once for both heads.
ASRC_LANE = 40           # lanes [40, 42): alpha_src for head 0, head 1
ADST_LANE = 42           # lanes [42, 44): alpha_dst for head 0, head 1
MASK_NEG = -1e30

assert OUT_CH <= ASRC_LANE and ADST_LANE + HEADS <= CPAD


def _gat_kernel(x_ref, adjb_ref, w_ref, bias_ref, o_ref):
    """One graph-group per grid step.

    x_ref    [R, F]   f32   node features (R = graphs_per_group * N rows)
    adjb_ref [R, R]   bf16  block-diagonal additive mask (0 on edge, ~-1e30 off)
    w_ref    [F, 128] f32   augmented weights (head slots + alpha columns)
    bias_ref [1, 128] f32   per-head bias in the head slots
    o_ref    [R, 128] f32   padded per-head outputs
    """
    x = x_ref[...]
    # F.elu with expm1 accuracy: expm1(x) = tanh(x/2) * (exp(x) + 1).
    # exp / tanh both land in the EUP slot; no exp(x)-1 cancellation near 0.
    x = jnp.where(x > 0.0, x, jnp.tanh(0.5 * x) * (jnp.exp(x) + 1.0))

    # Single fused MXU pass: padded head features + all attention logits.
    h_aug = jnp.dot(x, w_ref[...], preferred_element_type=jnp.float32)    # [R,128]

    adj_bias = adjb_ref[...].astype(jnp.float32)                          # [R, R]

    # Hoisted out of the head loop: one XLU relayout for both heads' src logits.
    a_dst = h_aug[:, ADST_LANE:ADST_LANE + HEADS]                         # [R, H]
    a_src_t = h_aug[:, ASRC_LANE:ASRC_LANE + HEADS].T                     # [H, R]

    head_out = []
    for hd in range(HEADS):
        # e[i, j] = LeakyReLU(alpha_dst[i] + alpha_src[j]) + mask_bias[i, j]
        e = a_dst[:, hd:hd + 1] + a_src_t[hd:hd + 1, :]                   # [R, R]
        e = jnp.where(e > 0.0, e, NEG_SLOPE * e)
        e = e + adj_bias
        # masked softmax over incoming edges (lane axis): masked entries
        # underflow to 0 in exp; self-loops guarantee finite row max, denom >= 1.
        m = jnp.max(e, axis=1, keepdims=True)
        p = jnp.exp(e - m)
        denom = jnp.sum(p, axis=1, keepdims=True)                         # [R, 1]

        # aggregate first, normalize the narrow result afterwards.
        h_head = h_aug[:, hd * CPAD:(hd + 1) * CPAD]                      # [R, 64]
        agg = jnp.dot(p, h_head, preferred_element_type=jnp.float32)      # [R, 64]
        inv = pl.reciprocal(denom, approx=True)                           # EUP slot
        inv = inv * (2.0 - denom * inv)                                   # Newton -> f32 accuracy
        head_out.append(agg * inv)

    # One lane-dense [R, 128] value -> single unmasked full-width store.
    o_ref[...] = jnp.concatenate(head_out, axis=1) + bias_ref[...]


def _edges_to_adj(edge_index, n):
    """Dense adjacency adj[b, dst, src] = 1 from edge_index [B, 2, E], plus
    self-loops (GATConv add_self_loops=True default)."""
    B, _, E = edge_index.shape
    adj = jnp.zeros((B, n, n), jnp.float32)
    b_idx = jnp.repeat(jnp.arange(B), E)
    src = edge_index[:, 0, :].reshape(-1)
    dst = edge_index[:, 1, :].reshape(-1)
    adj = adj.at[b_idx, dst, src].set(1.0)
    diag = jnp.arange(n)
    return adj.at[:, diag, diag].set(1.0)


def intra_graph_attention(x, edge_index, w, att_src, att_dst, bias,
                          *, rows_per_step=256):
    """x: [B, N, F] f32; edge_index: [B, 2, E] int (row 0 = src, row 1 = dst);
    w: [F, H*C]; att_src/att_dst: [1, H*C]; bias: [H*C].

    rows_per_step: target node rows per grid step (~128 on v5e, ~256 on v6e/v7x).
    """
    B, N, F_ = x.shape

    # TODO(synk): edge_index -> dense adjacency scatter stays in host JAX.
    adj = _edges_to_adj(edge_index, N)                        # [B, N, N]

    # ---- group graphs so each grid step works on a lane-dense row slab ----
    g = max(1, min(B, rows_per_step // N))                    # graphs per step
    G = -(-B // g)                                            # number of steps
    B_pad = G * g
    if B_pad != B:
        # Pad with dummy graphs: zero features, identity adjacency (self-loops
        # keep the masked softmax well-defined); stripped after the kernel.
        x = jnp.concatenate(
            [x, jnp.zeros((B_pad - B, N, F_), x.dtype)], axis=0)
        adj = jnp.concatenate(
            [adj, jnp.broadcast_to(jnp.eye(N, dtype=adj.dtype),
                                   (B_pad - B, N, N))], axis=0)
    R = g * N

    x_g = x.reshape(G, R, F_)
    # Block-diagonal adjacency per group; cross-graph entries stay masked.
    adj_bd = jnp.einsum("ab,gaij->gaibj",
                        jnp.eye(g, dtype=adj.dtype),
                        adj.reshape(G, g, N, N)).reshape(G, R, R)
    # Additive softmax bias, stored bf16 (the dominant per-step DMA operand).
    # NOTE: -1e30 is not exact in bf16 (~ -1.004e30); it only has to dominate
    # finite logits.
    adj_bias = jnp.where(adj_bd > 0, 0.0, MASK_NEG).astype(jnp.bfloat16)

    # ---- host-side parameter re-layout: one 128-lane augmented weight ----
    w3 = w.reshape(F_, HEADS, OUT_CH)
    a_src_eff = jnp.einsum("fhc,hc->fh", w3, att_src.reshape(HEADS, OUT_CH))
    a_dst_eff = jnp.einsum("fhc,hc->fh", w3, att_dst.reshape(HEADS, OUT_CH))
    b2 = bias.reshape(HEADS, OUT_CH)

    w_aug = jnp.zeros((F_, HCPAD), jnp.float32)
    bias_pad = jnp.zeros((1, HCPAD), jnp.float32)
    for hd in range(HEADS):
        w_aug = w_aug.at[:, hd * CPAD:hd * CPAD + OUT_CH].set(w3[:, hd, :])
        bias_pad = bias_pad.at[:, hd * CPAD:hd * CPAD + OUT_CH].set(b2[hd][None, :])
    w_aug = w_aug.at[:, ASRC_LANE:ASRC_LANE + HEADS].set(a_src_eff)
    w_aug = w_aug.at[:, ADST_LANE:ADST_LANE + HEADS].set(a_dst_eff)

    out_pad = pl.pallas_call(
        _gat_kernel,
        out_shape=jax.ShapeDtypeStruct((G, R, HCPAD), jnp.float32),
        grid=(G,),
        in_specs=[
            pl.BlockSpec((None, R, F_), lambda i: (i, 0, 0)),
            pl.BlockSpec((None, R, R), lambda i: (i, 0, 0)),
            pl.BlockSpec((F_, HCPAD), lambda i: (0, 0)),
            pl.BlockSpec((1, HCPAD), lambda i: (0, 0)),
        ],
        out_specs=pl.BlockSpec((None, R, HCPAD), lambda i: (i, 0, 0)),
        compiler_params=pltpu.CompilerParams(
            dimension_semantics=("parallel",)),
    )(x_g, adj_bias, w_aug, bias_pad)

    # strip dummy graphs and per-head lane padding -> [B, N, H*C]
    out_pad = out_pad.reshape(B_pad, N, HCPAD)[:B]
    return jnp.concatenate(
        [out_pad[..., hd * CPAD:hd * CPAD + OUT_CH] for hd in range(HEADS)],
        axis=-1)


def reference(x, edge_index, w, att_src, att_dst, bias):
    """Pure-JAX batched reference (PyG GATConv forward semantics on a dense
    adjacency; parallel duplicate edges collapse, same as the kernel)."""
    B, N, _ = x.shape
    adj = _edges_to_adj(edge_index, N)
    x = jax.nn.elu(x)
    h = jnp.einsum("bnf,fk->bnk", x, w)
    h3 = h.reshape(B, N, HEADS, OUT_CH)
    a_src = att_src.reshape(HEADS, OUT_CH)
    a_dst = att_dst.reshape(HEADS, OUT_CH)
    alpha_src = jnp.einsum("bnhc,hc->bnh", h3, a_src)
    alpha_dst = jnp.einsum("bnhc,hc->bnh", h3, a_dst)
    e = alpha_dst[:, :, None, :] + alpha_src[:, None, :, :]   # [B, dst, src, H]
    e = jnp.where(e > 0, e, NEG_SLOPE * e)
    mask = (adj > 0)[:, :, :, None]
    e = jnp.where(mask, e, MASK_NEG)
    p = jax.nn.softmax(e, axis=2)
    p = jnp.where(mask, p, 0.0)
    out = jnp.einsum("bijh,bjhc->bihc", p, h3)
    return out.reshape(B, N, HEADS * OUT_CH) + bias.reshape(1, 1, -1)


if __name__ == "__main__":
    B = 4            # graphs per batch (all folded into one lane-dense step)
    N = 16           # nodes per graph
    INPUT_DIM = 32   # module input_dim
    NUM_EDGES = 48

    key = jax.random.PRNGKey(0)
    kx, ke, kw, ks, kd = jax.random.split(key, 5)

    # node features
    x = jax.random.normal(kx, (B, N, INPUT_DIM), dtype=jnp.float32)
    # random edge_index per graph [B, 2, E] (row 0 = source, row 1 = target)
    edge_index = jax.random.randint(ke, (B, 2, NUM_EDGES), 0, N)

    # deterministic parameter init (glorot-ish), bias = 0 as in PyG
    hc = HEADS * OUT_CH
    w_scale = jnp.sqrt(2.0 / (INPUT_DIM + hc))
    w = jax.random.normal(kw, (INPUT_DIM, hc), dtype=jnp.float32) * w_scale
    a_scale = jnp.sqrt(2.0 / (1 + OUT_CH))
    att_src = jax.random.normal(ks, (1, hc), dtype=jnp.float32) * a_scale
    att_dst = jax.random.normal(kd, (1, hc), dtype=jnp.float32) * a_scale
    bias = jnp.zeros((hc,), dtype=jnp.float32)

    out = intra_graph_attention(x, edge_index, w, att_src, att_dst, bias)
    out = jax.block_until_ready(out)

    ref = reference(x, edge_index, w, att_src, att_dst, bias)
    assert out.shape == (B, N, hc), out.shape
    np.testing.assert_allclose(np.asarray(out), np.asarray(ref),
                               rtol=2e-3, atol=2e-3)
    print("KERNEL_OK")
</pallas_src>

<mosaic_0001>
module attributes {stable_mosaic.version = 11 : i64} {
  func.func @_gat_kernel(%arg0: i32, %arg1: memref<1x64x32xf32, #tpu.memory_space<vmem>>, %arg2: memref<1x64x64xbf16, #tpu.memory_space<vmem>>, %arg3: memref<32x128xf32, #tpu.memory_space<vmem>>, %arg4: memref<1x128xf32, #tpu.memory_space<vmem>>, %arg5: memref<1x64x128xf32, #tpu.memory_space<vmem>>) attributes {dimension_semantics = [#tpu.dimension_semantics<parallel>], iteration_bounds = array<i64: 1>, scalar_prefetch = 0 : i64, scratch_operands = 0 : i64, tpu.core_type = #tpu.core_type<tc>, window_params = [{transform_indices = @transform_0, window_bounds = array<i64: 1, 64, 32>}, {transform_indices = @transform_1, window_bounds = array<i64: 1, 64, 64>}, {pipeline_mode = #tpu.pipeline_mode<synchronous>, transform_indices = @transform_2, window_bounds = array<i64: 32, 128>}, {pipeline_mode = #tpu.pipeline_mode<synchronous>, transform_indices = @transform_3, window_bounds = array<i64: 1, 128>}, {transform_indices = @transform_4, window_bounds = array<i64: 1, 64, 128>}]} {
    %c0 = arith.constant 0 : index
    %c0_0 = arith.constant 0 : index
    %c0_1 = arith.constant 0 : index
    %0 = vector.load %arg1[%c0, %c0_0, %c0_1] : memref<1x64x32xf32, #tpu.memory_space<vmem>>, vector<1x64x32xf32>
    %1 = vector.shape_cast %0 : vector<1x64x32xf32> to vector<64x32xf32>
    %cst = arith.constant 0.000000e+00 : f32
    %2 = vector.broadcast %cst : f32 to vector<64x32xf32>
    %3 = arith.cmpf ogt, %1, %2 : vector<64x32xf32>
    %cst_2 = arith.constant 5.000000e-01 : f32
    %4 = vector.broadcast %cst_2 : f32 to vector<64x32xf32>
    %5 = arith.mulf %4, %1 : vector<64x32xf32>
    %6 = math.tanh %5 : vector<64x32xf32>
    %7 = math.exp %1 : vector<64x32xf32>
    %cst_3 = arith.constant 1.000000e+00 : f32
    %8 = vector.broadcast %cst_3 : f32 to vector<64x32xf32>
    %9 = arith.addf %7, %8 : vector<64x32xf32>
    %10 = arith.mulf %6, %9 : vector<64x32xf32>
    %11 = arith.select %3, %1, %10 : vector<64x32xi1>, vector<64x32xf32>
    %c0_4 = arith.constant 0 : index
    %c0_5 = arith.constant 0 : index
    %12 = vector.load %arg3[%c0_4, %c0_5] : memref<32x128xf32, #tpu.memory_space<vmem>>, vector<32x128xf32>
    %cst_6 = arith.constant dense<0.000000e+00> : vector<64x128xf32>
    %13 = tpu.matmul %11, %12, %cst_6 {dimension_numbers = #tpu.dot_dimension_numbers<[1], [0], [0], [1], [0, 0, 1, 1], [], []>} : vector<64x32xf32>, vector<32x128xf32>, vector<64x128xf32> -> vector<64x128xf32>
    %c0_7 = arith.constant 0 : index
    %c0_8 = arith.constant 0 : index
    %c0_9 = arith.constant 0 : index
    %14 = vector.load %arg2[%c0_7, %c0_8, %c0_9] : memref<1x64x64xbf16, #tpu.memory_space<vmem>>, vector<1x64x64xbf16>
    %15 = vector.shape_cast %14 : vector<1x64x64xbf16> to vector<64x64xbf16>
    %16 = arith.extf %15 : vector<64x64xbf16> to vector<64x64xf32>
    %17 = vector.extract_strided_slice %13 {offsets = [0, 42], sizes = [64, 2], strides = [1, 1]} : vector<64x128xf32> to vector<64x2xf32>
    %18 = vector.extract_strided_slice %13 {offsets = [0, 40], sizes = [64, 2], strides = [1, 1]} : vector<64x128xf32> to vector<64x2xf32>
    %19 = tpu.transpose %18, [1, 0] : vector<64x2xf32> -> vector<2x64xf32>
    %20 = vector.extract_strided_slice %17 {offsets = [0, 0], sizes = [64, 1], strides = [1, 1]} : vector<64x2xf32> to vector<64x1xf32>
    %21 = vector.extract_strided_slice %19 {offsets = [0, 0], sizes = [1, 64], strides = [1, 1]} : vector<2x64xf32> to vector<1x64xf32>
    %22 = vector.broadcast %20 : vector<64x1xf32> to vector<64x64xf32>
    %23 = vector.broadcast %21 : vector<1x64xf32> to vector<64x64xf32>
    %24 = arith.addf %22, %23 : vector<64x64xf32>
    %cst_10 = arith.constant 0.000000e+00 : f32
    %25 = vector.broadcast %cst_10 : f32 to vector<64x64xf32>
    %26 = arith.cmpf ogt, %24, %25 : vector<64x64xf32>
    %cst_11 = arith.constant 2.000000e-01 : f32
    %27 = vector.broadcast %cst_11 : f32 to vector<64x64xf32>
    %28 = arith.mulf %27, %24 : vector<64x64xf32>
    %29 = arith.select %26, %24, %28 : vector<64x64xi1>, vector<64x64xf32>
    %30 = arith.addf %29, %16 : vector<64x64xf32>
    %cst_12 = arith.constant dense<0xFF800000> : vector<64xf32>
    %31 = vector.multi_reduction <maximumf>, %30, %cst_12 [1] : vector<64x64xf32> to vector<64xf32>
    %32 = vector.shape_cast %31 : vector<64xf32> to vector<64x1xf32>
    %33 = vector.broadcast %32 : vector<64x1xf32> to vector<64x64xf32>
    %34 = arith.subf %30, %33 : vector<64x64xf32>
    %35 = math.exp %34 : vector<64x64xf32>
    %cst_13 = arith.constant dense<0.000000e+00> : vector<64xf32>
    %36 = vector.multi_reduction <add>, %35, %cst_13 [1] : vector<64x64xf32> to vector<64xf32>
    %37 = vector.shape_cast %36 : vector<64xf32> to vector<64x1xf32>
    %38 = vector.extract_strided_slice %13 {offsets = [0, 0], sizes = [64, 64], strides = [1, 1]} : vector<64x128xf32> to vector<64x64xf32>
    %cst_14 = arith.constant dense<0.000000e+00> : vector<64x64xf32>
    %39 = tpu.matmul %35, %38, %cst_14 {dimension_numbers = #tpu.dot_dimension_numbers<[1], [0], [0], [1], [0, 0, 1, 1], [], []>} : vector<64x64xf32>, vector<64x64xf32>, vector<64x64xf32> -> vector<64x64xf32>
    %40 = tpu.reciprocal %37 {approx = true} : vector<64x1xf32> -> vector<64x1xf32>
    %41 = arith.mulf %37, %40 : vector<64x1xf32>
    %cst_15 = arith.constant 2.000000e+00 : f32
    %42 = vector.broadcast %cst_15 : f32 to vector<64x1xf32>
    %43 = arith.subf %42, %41 : vector<64x1xf32>
    %44 = arith.mulf %40, %43 : vector<64x1xf32>
    %45 = vector.broadcast %44 : vector<64x1xf32> to vector<64x64xf32>
    %46 = arith.mulf %39, %45 : vector<64x64xf32>
    %47 = vector.extract_strided_slice %17 {offsets = [0, 1], sizes = [64, 1], strides = [1, 1]} : vector<64x2xf32> to vector<64x1xf32>
    %48 = vector.extract_strided_slice %19 {offsets = [1, 0], sizes = [1, 64], strides = [1, 1]} : vector<2x64xf32> to vector<1x64xf32>
    %49 = vector.broadcast %47 : vector<64x1xf32> to vector<64x64xf32>
    %50 = vector.broadcast %48 : vector<1x64xf32> to vector<64x64xf32>
    %51 = arith.addf %49, %50 : vector<64x64xf32>
    %cst_16 = arith.constant 0.000000e+00 : f32
    %52 = vector.broadcast %cst_16 : f32 to vector<64x64xf32>
    %53 = arith.cmpf ogt, %51, %52 : vector<64x64xf32>
    %cst_17 = arith.constant 2.000000e-01 : f32
    %54 = vector.broadcast %cst_17 : f32 to vector<64x64xf32>
    %55 = arith.mulf %54, %51 : vector<64x64xf32>
    %56 = arith.select %53, %51, %55 : vector<64x64xi1>, vector<64x64xf32>
    %57 = arith.addf %56, %16 : vector<64x64xf32>
    %cst_18 = arith.constant dense<0xFF800000> : vector<64xf32>
    %58 = vector.multi_reduction <maximumf>, %57, %cst_18 [1] : vector<64x64xf32> to vector<64xf32>
    %59 = vector.shape_cast %58 : vector<64xf32> to vector<64x1xf32>
    %60 = vector.broadcast %59 : vector<64x1xf32> to vector<64x64xf32>
    %61 = arith.subf %57, %60 : vector<64x64xf32>
    %62 = math.exp %61 : vector<64x64xf32>
    %cst_19 = arith.constant dense<0.000000e+00> : vector<64xf32>
    %63 = vector.multi_reduction <add>, %62, %cst_19 [1] : vector<64x64xf32> to vector<64xf32>
    %64 = vector.shape_cast %63 : vector<64xf32> to vector<64x1xf32>
    %65 = vector.extract_strided_slice %13 {offsets = [0, 64], sizes = [64, 64], strides = [1, 1]} : vector<64x128xf32> to vector<64x64xf32>
    %cst_20 = arith.constant dense<0.000000e+00> : vector<64x64xf32>
    %66 = tpu.matmul %62, %65, %cst_20 {dimension_numbers = #tpu.dot_dimension_numbers<[1], [0], [0], [1], [0, 0, 1, 1], [], []>} : vector<64x64xf32>, vector<64x64xf32>, vector<64x64xf32> -> vector<64x64xf32>
    %67 = tpu.reciprocal %64 {approx = true} : vector<64x1xf32> -> vector<64x1xf32>
    %68 = arith.mulf %64, %67 : vector<64x1xf32>
    %cst_21 = arith.constant 2.000000e+00 : f32
    %69 = vector.broadcast %cst_21 : f32 to vector<64x1xf32>
    %70 = arith.subf %69, %68 : vector<64x1xf32>
    %71 = arith.mulf %67, %70 : vector<64x1xf32>
    %72 = vector.broadcast %71 : vector<64x1xf32> to vector<64x64xf32>
    %73 = arith.mulf %66, %72 : vector<64x64xf32>
    %74 = tpu.concatenate %46, %73 in 1 : vector<64x64xf32>, vector<64x64xf32> -> vector<64x128xf32>
    %c0_22 = arith.constant 0 : index
    %c0_23 = arith.constant 0 : index
    %75 = vector.load %arg4[%c0_22, %c0_23] : memref<1x128xf32, #tpu.memory_space<vmem>>, vector<1x128xf32>
    %76 = vector.broadcast %75 : vector<1x128xf32> to vector<64x128xf32>
    %77 = arith.addf %74, %76 : vector<64x128xf32>
    %c0_24 = arith.constant 0 : index
    %c0_25 = arith.constant 0 : index
    %c0_26 = arith.constant 0 : index
    %78 = vector.load %arg5[%c0_24, %c0_25, %c0_26] : memref<1x64x128xf32, #tpu.memory_space<vmem>>, vector<1x64x128xf32>
    %79 = vector.shape_cast %78 : vector<1x64x128xf32> to vector<64x128xf32>
    %80 = vector.shape_cast %77 : vector<64x128xf32> to vector<1x64x128xf32>
    tpu.vector_store %arg5[%c0_24, %c0_25, %c0_26], %80 {strides = array<i32>} : memref<1x64x128xf32, #tpu.memory_space<vmem>>, vector<1x64x128xf32>,
    return
  }
  func.func @transform_0(%arg0: i32) -> (i32, i32, i32) {
    %c0_i32 = arith.constant 0 : i32
    %c0_i32_0 = arith.constant 0 : i32
    %c0_i32_1 = arith.constant 0 : i32
    return %arg0, %c0_i32, %c0_i32_0 : i32, i32, i32
  }
  func.func @transform_1(%arg0: i32) -> (i32, i32, i32) {
    %c0_i32 = arith.constant 0 : i32
    %c0_i32_0 = arith.constant 0 : i32
    %c0_i32_1 = arith.constant 0 : i32
    return %arg0, %c0_i32, %c0_i32_0 : i32, i32, i32
  }
  func.func @transform_2(%arg0: i32) -> (i32, i32) {
    %c0_i32 = arith.constant 0 : i32
    %c0_i32_0 = arith.constant 0 : i32
    %c0_i32_1 = arith.constant 0 : i32
    return %c0_i32, %c0_i32_0 : i32, i32
  }
  func.func @transform_3(%arg0: i32) -> (i32, i32) {
    %c0_i32 = arith.constant 0 : i32
    %c0_i32_0 = arith.constant 0 : i32
    %c0_i32_1 = arith.constant 0 : i32
    return %c0_i32, %c0_i32_0 : i32, i32
  }
  func.func @transform_4(%arg0: i32) -> (i32, i32, i32) {
    %c0_i32 = arith.constant 0 : i32
    %c0_i32_0 = arith.constant 0 : i32
    %c0_i32_1 = arith.constant 0 : i32
    return %arg0, %c0_i32, %c0_i32_0 : i32, i32, i32
  }
}

</mosaic_0001>

<llo_original>
// kernel: tpu_custom_call.1
$region0: #{tpu_custom_call.1}
  #allocation0 [shape = 'u32[]', space=smem, size = 0x4, offset = 0x4, fixed_abs, tag = 'smem constant byte address 0x4 - core index']
  #allocation1 [shape = 'u32[144,128]{1,0:T(1,128)}', space=vmem, size = 0x12000, scoped, tag = 'internal scratch']
  %s0 = inlined_call_operand.vmem [shape: f32[1,64,32], index: 0, kind: input, shape index: {}]
  %s1 = inlined_call_operand.vmem [shape: bf16[1,64,64], index: 1, kind: input, shape index: {}]
  %s2 = inlined_call_operand.vmem [shape: f32[32,128], index: 2, kind: input, shape index: {}]
  %s3 = inlined_call_operand.vmem [shape: f32[1,128], index: 3, kind: input, shape index: {}]
  %s4 = inlined_call_operand.hbm [shape: f32[1,64,128], index: 4, kind: output, shape index: {}]
  %s5 = sld [smem:[#allocation0]]
  $region26: #{tpu_custom_call.1} parent=0
    _
  %s7 = ssub.s32 1, %s5
  %s8 = scalar_select 0, %s7, %s5
  $region1: #{tpu_custom_call.1} parent=0
    #allocation2 [shape = 'u8[32768]{0}', space=vmem, size = 0x8000, scoped, tag = 'output window, operand 0, single buffered']
    #allocation3 [shape = 's32[1]{0}', space=sflag, size = 0x4, scoped, tag = 'scoped memory for tpu_custom_call.1']
    %9 = vsyncpa [#allocation3], 0
    // Predicated region
    $region2: #{tpu_custom_call.1} parent=1 // pred_check
      _
    $region3: #{tpu_custom_call.1} parent=1 // pred_check_branch
      %11 = sbr.rel (0) target = $region5
    $region4: #{tpu_custom_call.1} parent=1 // pred_region
      _
    $region5: #{tpu_custom_call.1} parent=1 // pred_fallthru
      _
    // Predicated region
    $region6: #{tpu_custom_call.1} parent=1 // pred_check
      _
    $region7: #{tpu_custom_call.1} parent=1 // pred_check_branch
      %13 = sbr.rel (0) target = $region9
    $region8: #{tpu_custom_call.1} parent=1 // pred_region
      _
    $region9: #{tpu_custom_call.1} parent=1 // pred_fallthru
      _
    // Predicated region
    $region10: #{tpu_custom_call.1} parent=1 // pred_check
      _
    $region11: #{tpu_custom_call.1} parent=1 // pred_check_branch
      %15 = sbr.rel (0) target = $region13
    $region12: #{tpu_custom_call.1} parent=1 // pred_region
      _
    $region13: #{tpu_custom_call.1} parent=1 // pred_fallthru
      _
    // Predicated region
    $region14: #{tpu_custom_call.1} parent=1 // pred_check
      _
    $region15: #{tpu_custom_call.1} parent=1 // pred_check_branch
      %17 = sbr.rel (0) target = $region17
    $region16: #{tpu_custom_call.1} parent=1 // pred_region
      _
    $region17: #{tpu_custom_call.1} parent=1 // pred_fallthru
      _
    %v18 = vld [vmem:[%s0] sm:$0xff]
    %v19 = vld [vmem:[%s0 + $0x8] sm:$0xff]
    %v20 = vld [vmem:[%s0 + $0x10] sm:$0xff]
    %v21 = vld [vmem:[%s0 + $0x18] sm:$0xff]
    %v22 = vld [vmem:[%s0 + $0x20] sm:$0xff]
    %v23 = vld [vmem:[%s0 + $0x28] sm:$0xff]
    %v24 = vld [vmem:[%s0 + $0x30] sm:$0xff]
    %v25 = vld [vmem:[%s0 + $0x38] sm:$0xff]
    %vm26 = vcmp.gt.f32.partialorder %v18, 0.0
    %vm27 = vcmp.gt.f32.partialorder %v19, 0.0
    %vm28 = vcmp.gt.f32.partialorder %v20, 0.0
    %vm29 = vcmp.gt.f32.partialorder %v21, 0.0
    %vm30 = vcmp.gt.f32.partialorder %v22, 0.0
    %vm31 = vcmp.gt.f32.partialorder %v23, 0.0
    %vm32 = vcmp.gt.f32.partialorder %v24, 0.0
    %vm33 = vcmp.gt.f32.partialorder %v25, 0.0
    %v34 = vmul.f32 %v18, 0.5
    %v35 = vmul.f32 %v19, 0.5
    %v36 = vmul.f32 %v20, 0.5
    %v37 = vmul.f32 %v21, 0.5
    %v38 = vmul.f32 %v22, 0.5
    %v39 = vmul.f32 %v23, 0.5
    %v40 = vmul.f32 %v24, 0.5
    %v41 = vmul.f32 %v25, 0.5
    %v42 = vtanh.pop %v34
    %v43 = vtanh.pop %v35
    %v44 = vtanh.pop %v36
    %v45 = vtanh.pop %v37
    %v46 = vtanh.pop %v38
    %v47 = vtanh.pop %v39
    %v48 = vtanh.pop %v40
    %v49 = vtanh.pop %v41
    %v50 = vmul.f32 %v18, 1.442695
    %v51 = vpow.pop %v50
    %v52 = vmul.f32 %v19, 1.442695
    %v53 = vpow.pop %v52
    %v54 = vmul.f32 %v20, 1.442695
    %v55 = vpow.pop %v54
    %v56 = vmul.f32 %v21, 1.442695
    %v57 = vpow.pop %v56
    %v58 = vmul.f32 %v22, 1.442695
    %v59 = vpow.pop %v58
    %v60 = vmul.f32 %v23, 1.442695
    %v61 = vpow.pop %v60
    %v62 = vmul.f32 %v24, 1.442695
    %v63 = vpow.pop %v62
    %v64 = vmul.f32 %v25, 1.442695
    %v65 = vpow.pop %v64
    %v66 = vadd.f32 %v51, 1.0
    %v67 = vadd.f32 %v53, 1.0
    %v68 = vadd.f32 %v55, 1.0
    %v69 = vadd.f32 %v57, 1.0
    %v70 = vadd.f32 %v59, 1.0
    %v71 = vadd.f32 %v61, 1.0
    %v72 = vadd.f32 %v63, 1.0
    %v73 = vadd.f32 %v65, 1.0
    %v74 = vmul.f32 %v42, %v66
    %v75 = vmul.f32 %v43, %v67
    %v76 = vmul.f32 %v44, %v68
    %v77 = vmul.f32 %v45, %v69
    %v78 = vmul.f32 %v46, %v70
    %v79 = vmul.f32 %v47, %v71
    %v80 = vmul.f32 %v48, %v72
    %v81 = vmul.f32 %v49, %v73
    %v82 = vsel %vm26, %v18, %v74
    %v83 = vsel %vm27, %v19, %v75
    %v84 = vsel %vm28, %v20, %v76
    %v85 = vsel %vm29, %v21, %v77
    %v86 = vsel %vm30, %v22, %v78
    %v87 = vsel %vm31, %v23, %v79
    %v88 = vsel %vm32, %v24, %v80
    %v89 = vsel %vm33, %v25, %v81
    %v90 = vld [vmem:[%s2] sm:$0xff]
    %v91 = vld [vmem:[%s2 + $0x8] sm:$0xff]
    %v92 = vld [vmem:[%s2 + $0x10] sm:$0xff]
    %v93 = vld [vmem:[%s2 + $0x18] sm:$0xff]
    %vm94 = vcmask 261120
    %v96 = vsel %vm94, %v82, 0
    %v99 = vsel %vm94, %v83, 0
    %v102 = vsel %vm94, %v84, 0
    %v105 = vsel %vm94, %v85, 0
    %v108 = vsel %vm94, %v86, 0
    %v111 = vsel %vm94, %v87, 0
    %v114 = vsel %vm94, %v88, 0
    %v117 = vsel %vm94, %v89, 0
    %119 = vmatprep.subr.mxu0 0.0
    %120 = vmatpush1.msra.mxu0 0.0
    %121 = vmatprep.subr.mxu0 0.0
    %122 = vmatpush1.msra.mxu0 0.0
    %123 = vmatprep.subr.mxu0 0.0
    %124 = vmatpush1.msra.mxu0 0.0
    %125 = vmatprep.subr.mxu0 0.0
    %126 = vmatpush1.msra.mxu0 0.0
    %127 = vmatprep.subr.mxu0 0.0
    %128 = vmatpush1.msra.mxu0 0.0
    %129 = vmatprep.subr.mxu0 0.0
    %130 = vmatpush1.msra.mxu0 0.0
    %131 = vmatprep.subr.mxu0 0.0
    %132 = vmatpush1.msra.mxu0 0.0
    %133 = vmatprep.subr.mxu0 0.0
    %134 = vmatpush1.msra.mxu0 0.0
    %135 = vmatprep.subr.mxu0 0.0
    %136 = vmatpush1.msra.mxu0 0.0
    %137 = vmatprep.subr.mxu0 0.0
    %138 = vmatpush1.msra.mxu0 0.0
    %139 = vmatprep.subr.mxu0 0.0
    %140 = vmatpush1.msra.mxu0 0.0
    %141 = vmatprep.subr.mxu0 0.0
    %142 = vmatpush1.msra.mxu0 0.0
    %143 = vmatprep.subr.mxu0 0.0
    %144 = vmatpush1.msra.mxu0 %v93
    %145 = vmatprep.subr.mxu0 0.0
    %146 = vmatpush1.msra.mxu0 %v92
    %147 = vmatprep.subr.mxu0 0.0
    %148 = vmatpush1.msra.mxu0 %v91
    %149 = vmatprep.subr.mxu0 0.0
    %150 = vmatpush1.msra.mxu0 %v90
    %151 = vmatprep.subr.mxu0 0.0
    %152 = vmatpush2.msra.mxu0 0.0
    %153 = vmatprep.subr.mxu0 0.0
    %154 = vmatpush2.msra.mxu0 0.0
    %155 = vmatprep.subr.mxu0 0.0
    %156 = vmatpush2.msra.mxu0 0.0
    %157 = vmatprep.subr.mxu0 0.0
    %158 = vmatpush2.msra.mxu0 0.0
    %159 = vmatprep.subr.mxu0 0.0
    %160 = vmatpush2.msra.mxu0 0.0
    %161 = vmatprep.subr.mxu0 0.0
    %162 = vmatpush2.msra.mxu0 0.0
    %163 = vmatprep.subr.mxu0 0.0
    %164 = vmatpush2.msra.mxu0 0.0
    %165 = vmatprep.subr.mxu0 0.0
    %166 = vmatpush2.msra.mxu0 0.0
    %167 = vmatprep.subr.mxu0 0.0
    %168 = vmatpush2.msra.mxu0 0.0
    %169 = vmatprep.subr.mxu0 0.0
    %170 = vmatpush2.msra.mxu0 0.0
    %171 = vmatprep.subr.mxu0 0.0
    %172 = vmatpush2.msra.mxu0 0.0
    %173 = vmatprep.subr.mxu0 0.0
    %174 = vmatpush2.msra.mxu0 0.0
    %175 = vmatprep.subr.mxu0 0.0
    %176 = vmatpush2.msra.mxu0 0.0
    %177 = vmatprep.subr.mxu0 0.0
    %178 = vmatpush2.msra.mxu0 0.0
    %179 = vmatprep.subr.mxu0 0.0
    %180 = vmatpush2.msra.mxu0 0.0
    %181 = vmatprep.subr.mxu0 0.0
    %182 = vmatpush2.msra.mxu0 0.0
    %183 = vmatprep.mubr.f32.mxu0 0.0
    %184 = vmatmul.mubr.f32.gmra.mxu0 %v96
    %v185 = vpop.f32.mrf.mxu0
    %v186 = vadd.f32 0.0, %v185
    %v187 = vpop.f32.mrf.mxu0
    %188 = vmatprep.mubr.f32.mxu0 0.0
    %189 = vmatmul.mubr.f32.gmra.mxu0 %v99
    %v190 = vpop.f32.mrf.mxu0
    %v191 = vadd.f32 0.0, %v190
    %v192 = vpop.f32.mrf.mxu0
    %193 = vmatprep.mubr.f32.mxu0 0.0
    %194 = vmatmul.mubr.f32.gmra.mxu0 %v102
    %v195 = vpop.f32.mrf.mxu0
    %v196 = vadd.f32 0.0, %v195
    %v197 = vpop.f32.mrf.mxu0
    %198 = vmatprep.mubr.f32.mxu0 0.0
    %199 = vmatmul.mubr.f32.gmra.mxu0 %v105
    %v200 = vpop.f32.mrf.mxu0
    %v201 = vadd.f32 0.0, %v200
    %v202 = vpop.f32.mrf.mxu0
    %203 = vmatprep.mubr.f32.mxu0 0.0
    %204 = vmatmul.mubr.f32.gmra.mxu0 %v108
    %v205 = vpop.f32.mrf.mxu0
    %v206 = vadd.f32 0.0, %v205
    %v207 = vpop.f32.mrf.mxu0
    %208 = vmatprep.mubr.f32.mxu0 0.0
    %209 = vmatmul.mubr.f32.gmra.mxu0 %v111
    %v210 = vpop.f32.mrf.mxu0
    %v211 = vadd.f32 0.0, %v210
    %v212 = vpop.f32.mrf.mxu0
    %213 = vmatprep.mubr.f32.mxu0 0.0
    %214 = vmatmul.mubr.f32.gmra.mxu0 %v114
    %v215 = vpop.f32.mrf.mxu0
    %v216 = vadd.f32 0.0, %v215
    %v217 = vpop.f32.mrf.mxu0
    %218 = vmatprep.mubr.f32.mxu0 0.0
    %219 = vmatmul.mubr.f32.gmra.mxu0 %v117
    %v220 = vpop.f32.mrf.mxu0
    %v221 = vadd.f32 0.0, %v220
    %v222 = vpop.f32.mrf.mxu0
    %223 = vdwg.mxu0
    %v224 = vld [vmem:[%s1] sm:$0xf]
    %v225 = vld [vmem:[%s1 + $0x4] sm:$0xf]
    %v226 = vld [vmem:[%s1 + $0x8] sm:$0xf]
    %v227 = vld [vmem:[%s1 + $0xc] sm:$0xf]
    %v228 = vld [vmem:[%s1 + $0x10] sm:$0xf]
    %v229 = vld [vmem:[%s1 + $0x14] sm:$0xf]
    %v230 = vld [vmem:[%s1 + $0x18] sm:$0xf]
    %v231 = vld [vmem:[%s1 + $0x1c] sm:$0xf]
    %v232 = vunpack.c.l.bf16 %v224
    %v233 = vunpack.c.l.bf16 %v225
    %v234 = vunpack.c.l.bf16 %v226
    %v235 = vunpack.c.l.bf16 %v227
    %v236 = vunpack.c.l.bf16 %v228
    %v237 = vunpack.c.l.bf16 %v229
    %v238 = vunpack.c.l.bf16 %v230
    %v239 = vunpack.c.l.bf16 %v231
    %248 = vrot.lane.b32.xlu0 %v186, 88
    %v249 = vpop.permute.xlu0 %248
    %250 = vrot.lane.b32.xlu0 %v191, 88
    %v251 = vpop.permute.xlu0 %250
    %252 = vrot.lane.b32.xlu0 %v196, 88
    %v253 = vpop.permute.xlu0 %252
    %254 = vrot.lane.b32.xlu0 %v201, 88
    %v255 = vpop.permute.xlu0 %254
    %256 = vrot.lane.b32.xlu0 %v206, 88
    %v257 = vpop.permute.xlu0 %256
    %258 = vrot.lane.b32.xlu0 %v211, 88
    %v259 = vpop.permute.xlu0 %258
    %260 = vrot.lane.b32.xlu0 %v216, 88
    %v261 = vpop.permute.xlu0 %260
    %262 = vrot.lane.b32.xlu0 %v221, 88
    %v263 = vpop.permute.xlu0 %262
    %272 = vxpose.xlu0.b32.start [1/16] %v249, 128
    %273 = vxpose.xlu0.b32.cont [2/16] %v251, 128
    %274 = vxpose.xlu0.b32.cont [3/16] %v253, 128
    %275 = vxpose.xlu0.b32.cont [4/16] %v255, 128
    %276 = vxpose.xlu0.b32.cont [5/16] %v257, 128
    %277 = vxpose.xlu0.b32.cont [6/16] %v259, 128
    %278 = vxpose.xlu0.b32.cont [7/16] %v261, 128
    %279 = vxpose.xlu0.b32.cont [8/16] %v263, 128
    %280 = vxpose.xlu0.b32.cont [9/16] 0.0, 128
    %281 = vxpose.xlu0.b32.cont [10/16] 0.0, 128
    %282 = vxpose.xlu0.b32.cont [11/16] 0.0, 128
    %283 = vxpose.xlu0.b32.cont [12/16] 0.0, 128
    %284 = vxpose.xlu0.b32.cont [13/16] 0.0, 128
    %285 = vxpose.xlu0.b32.cont [14/16] 0.0, 128
    %286 = vxpose.xlu0.b32.cont [15/16] 0.0, 128
    %287 = vxpose.xlu0.b32.end [16/16] 0.0, 128
    %v288 = vpop.trf.xlu0
    %v289 = vpop.trf.xlu0
    %v290 = vpop.trf.xlu0
    %v291 = vpop.trf.xlu0
    %v292 = vpop.trf.xlu0
    %v293 = vpop.trf.xlu0
    %v294 = vpop.trf.xlu0
    %v295 = vpop.trf.xlu0
    %v296 = vpop.trf.xlu0
    %v297 = vpop.trf.xlu0
    %v298 = vpop.trf.xlu0
    %v299 = vpop.trf.xlu0
    %v300 = vpop.trf.xlu0
    %v301 = vpop.trf.xlu0
    %v302 = vpop.trf.xlu0
    %v303 = vpop.trf.xlu0
    %304 = vset.pattern.permute.xlu0 42
    %305 = vperm.xlu0 %304, %v186
    %v306 = vpop.permute.xlu0 %305
    %308 = vset.pattern.permute.xlu0 42
    %309 = vperm.xlu0 %308, %v191
    %v310 = vpop.permute.xlu0 %309
    %312 = vset.pattern.permute.xlu0 42
    %313 = vperm.xlu0 %312, %v196
    %v314 = vpop.permute.xlu0 %313
    %316 = vset.pattern.permute.xlu0 42
    %317 = vperm.xlu0 %316, %v201
    %v318 = vpop.permute.xlu0 %317
    %320 = vset.pattern.permute.xlu0 42
    %321 = vperm.xlu0 %320, %v206
    %v322 = vpop.permute.xlu0 %321
    %324 = vset.pattern.permute.xlu0 42
    %325 = vperm.xlu0 %324, %v211
    %v326 = vpop.permute.xlu0 %325
    %328 = vset.pattern.permute.xlu0 42
    %329 = vperm.xlu0 %328, %v216
    %v330 = vpop.permute.xlu0 %329
    %332 = vset.pattern.permute.xlu0 42
    %333 = vperm.xlu0 %332, %v221
    %v334 = vpop.permute.xlu0 %333
    %v336 = vlaneseq
    %v337 = vshrl.u32 %v336, 7
    %v338 = vsub.s32 0, %v337
    %v339 = vrot.slane %v288, %v338
    %v340 = vadd.f32 %v306, %v339
    %v341 = vadd.f32 %v310, %v339
    %v342 = vadd.f32 %v314, %v339
    %v343 = vadd.f32 %v318, %v339
    %v344 = vadd.f32 %v322, %v339
    %v345 = vadd.f32 %v326, %v339
    %v346 = vadd.f32 %v330, %v339
    %v347 = vadd.f32 %v334, %v339
    %vm348 = vcmp.gt.f32.partialorder %v340, 0.0
    %vm349 = vcmp.gt.f32.partialorder %v341, 0.0
    %vm350 = vcmp.gt.f32.partialorder %v342, 0.0
    %vm351 = vcmp.gt.f32.partialorder %v343, 0.0
    %vm352 = vcmp.gt.f32.partialorder %v344, 0.0
    %vm353 = vcmp.gt.f32.partialorder %v345, 0.0
    %vm354 = vcmp.gt.f32.partialorder %v346, 0.0
    %vm355 = vcmp.gt.f32.partialorder %v347, 0.0
    %v356 = vmul.f32 %v340, 0.2
    %v357 = vmul.f32 %v341, 0.2
    %v358 = vmul.f32 %v342, 0.2
    %v359 = vmul.f32 %v343, 0.2
    %v360 = vmul.f32 %v344, 0.2
    %v361 = vmul.f32 %v345, 0.2
    %v362 = vmul.f32 %v346, 0.2
    %v363 = vmul.f32 %v347, 0.2
    %v364 = vsel %vm348, %v340, %v356
    %v365 = vsel %vm349, %v341, %v357
    %v366 = vsel %vm350, %v342, %v358
    %v367 = vsel %vm351, %v343, %v359
    %v368 = vsel %vm352, %v344, %v360
    %v369 = vsel %vm353, %v345, %v361
    %v370 = vsel %vm354, %v346, %v362
    %v371 = vsel %vm355, %v347, %v363
    %v372 = vadd.f32 %v364, %v232
    %v373 = vadd.f32 %v365, %v233
    %v374 = vadd.f32 %v366, %v234
    %v375 = vadd.f32 %v367, %v235
    %v376 = vadd.f32 %v368, %v236
    %v377 = vadd.f32 %v369, %v237
    %v378 = vadd.f32 %v370, %v238
    %v379 = vadd.f32 %v371, %v239
    %vm380 = vcmask 523264
    %v381 = vsel %vm380, %v372, -inf
    %382 = vmax.xlane.f32.xlu0 %v381
    %v383 = vpop.xlane.xlu0 %382
    %v384 = vsel %vm380, %v373, -inf
    %385 = vmax.xlane.f32.xlu0 %v384
    %v386 = vpop.xlane.xlu0 %385
    %v387 = vsel %vm380, %v374, -inf
    %388 = vmax.xlane.f32.xlu0 %v387
    %v389 = vpop.xlane.xlu0 %388
    %v390 = vsel %vm380, %v375, -inf
    %391 = vmax.xlane.f32.xlu0 %v390
    %v392 = vpop.xlane.xlu0 %391
    %v393 = vsel %vm380, %v376, -inf
    %394 = vmax.xlane.f32.xlu0 %v393
    %v395 = vpop.xlane.xlu0 %394
    %v396 = vsel %vm380, %v377, -inf
    %397 = vmax.xlane.f32.xlu0 %v396
    %v398 = vpop.xlane.xlu0 %397
    %v399 = vsel %vm380, %v378, -inf
    %400 = vmax.xlane.f32.xlu0 %v399
    %v401 = vpop.xlane.xlu0 %400
    %v402 = vsel %vm380, %v379, -inf
    %403 = vmax.xlane.f32.xlu0 %v402
    %v404 = vpop.xlane.xlu0 %403
    %v405 = vsub.f32 %v372, %v383
    %v406 = vsub.f32 %v373, %v386
    %v407 = vsub.f32 %v374, %v389
    %v408 = vsub.f32 %v375, %v392
    %v409 = vsub.f32 %v376, %v395
    %v410 = vsub.f32 %v377, %v398
    %v411 = vsub.f32 %v378, %v401
    %v412 = vsub.f32 %v379, %v404
    %v413 = vmul.f32 %v405, 1.442695
    %v414 = vpow.pop %v413
    %v415 = vmul.f32 %v406, 1.442695
    %v416 = vpow.pop %v415
    %v417 = vmul.f32 %v407, 1.442695
    %v418 = vpow.pop %v417
    %v419 = vmul.f32 %v408, 1.442695
    %v420 = vpow.pop %v419
    %v421 = vmul.f32 %v409, 1.442695
    %v422 = vpow.pop %v421
    %v423 = vmul.f32 %v410, 1.442695
    %v424 = vpow.pop %v423
    %v425 = vmul.f32 %v411, 1.442695
    %v426 = vpow.pop %v425
    %v427 = vmul.f32 %v412, 1.442695
    %v428 = vpow.pop %v427
    %v429 = vsel %vm380, %v414, 0.0
    %430 = vadd.xlane.f32.xlu0 %v429
    %v431 = vpop.xlane.xlu0 %430
    %v432 = vsel %vm380, %v416, 0.0
    %433 = vadd.xlane.f32.xlu0 %v432
    %v434 = vpop.xlane.xlu0 %433
    %v435 = vsel %vm380, %v418, 0.0
    %436 = vadd.xlane.f32.xlu0 %v435
    %v437 = vpop.xlane.xlu0 %436
    %v438 = vsel %vm380, %v420, 0.0
    %439 = vadd.xlane.f32.xlu0 %v438
    %v440 = vpop.xlane.xlu0 %439
    %v441 = vsel %vm380, %v422, 0.0
    %442 = vadd.xlane.f32.xlu0 %v441
    %v443 = vpop.xlane.xlu0 %442
    %v444 = vsel %vm380, %v424, 0.0
    %445 = vadd.xlane.f32.xlu0 %v444
    %v446 = vpop.xlane.xlu0 %445
    %v447 = vsel %vm380, %v426, 0.0
    %448 = vadd.xlane.f32.xlu0 %v447
    %v449 = vpop.xlane.xlu0 %448
    %v450 = vsel %vm380, %v428, 0.0
    %451 = vadd.xlane.f32.xlu0 %v450
    %v452 = vpop.xlane.xlu0 %451
    %v454 = vsel %vm380, %v414, 0
    %v457 = vsel %vm380, %v416, 0
    %v460 = vsel %vm380, %v418, 0
    %v463 = vsel %vm380, %v420, 0
    %v466 = vsel %vm380, %v422, 0
    %v469 = vsel %vm380, %v424, 0
    %v472 = vsel %vm380, %v426, 0
    %v475 = vsel %vm380, %v428, 0
    %477 = vmatprep.subr.mxu0 0.0
    %478 = vmatpush1.msra.mxu0 0.0
    %479 = vmatprep.subr.mxu0 0.0
    %480 = vmatpush1.msra.mxu0 0.0
    %481 = vmatprep.subr.mxu0 0.0
    %482 = vmatpush1.msra.mxu0 0.0
    %483 = vmatprep.subr.mxu0 0.0
    %484 = vmatpush1.msra.mxu0 0.0
    %485 = vmatprep.subr.mxu0 0.0
    %486 = vmatpush1.msra.mxu0 0.0
    %487 = vmatprep.subr.mxu0 0.0
    %488 = vmatpush1.msra.mxu0 0.0
    %489 = vmatprep.subr.mxu0 0.0
    %490 = vmatpush1.msra.mxu0 0.0
    %491 = vmatprep.subr.mxu0 0.0
    %492 = vmatpush1.msra.mxu0 0.0
    %493 = vmatprep.subr.mxu0 0.0
    %494 = vmatpush1.msra.mxu0 %v221
    %495 = vmatprep.subr.mxu0 0.0
    %496 = vmatpush1.msra.mxu0 %v216
    %497 = vmatprep.subr.mxu0 0.0
    %498 = vmatpush1.msra.mxu0 %v211
    %499 = vmatprep.subr.mxu0 0.0
    %500 = vmatpush1.msra.mxu0 %v206
    %501 = vmatprep.subr.mxu0 0.0
    %502 = vmatpush1.msra.mxu0 %v201
    %503 = vmatprep.subr.mxu0 0.0
    %504 = vmatpush1.msra.mxu0 %v196
    %505 = vmatprep.subr.mxu0 0.0
    %506 = vmatpush1.msra.mxu0 %v191
    %507 = vmatprep.subr.mxu0 0.0
    %508 = vmatpush1.msra.mxu0 %v186
    %509 = vmatprep.subr.mxu0 0.0
    %510 = vmatpush2.msra.mxu0 0.0
    %511 = vmatprep.subr.mxu0 0.0
    %512 = vmatpush2.msra.mxu0 0.0
    %513 = vmatprep.subr.mxu0 0.0
    %514 = vmatpush2.msra.mxu0 0.0
    %515 = vmatprep.subr.mxu0 0.0
    %516 = vmatpush2.msra.mxu0 0.0
    %517 = vmatprep.subr.mxu0 0.0
    %518 = vmatpush2.msra.mxu0 0.0
    %519 = vmatprep.subr.mxu0 0.0
    %520 = vmatpush2.msra.mxu0 0.0
    %521 = vmatprep.subr.mxu0 0.0
    %522 = vmatpush2.msra.mxu0 0.0
    %523 = vmatprep.subr.mxu0 0.0
    %524 = vmatpush2.msra.mxu0 0.0
    %525 = vmatprep.subr.mxu0 0.0
    %526 = vmatpush2.msra.mxu0 0.0
    %527 = vmatprep.subr.mxu0 0.0
    %528 = vmatpush2.msra.mxu0 0.0
    %529 = vmatprep.subr.mxu0 0.0
    %530 = vmatpush2.msra.mxu0 0.0
    %531 = vmatprep.subr.mxu0 0.0
    %532 = vmatpush2.msra.mxu0 0.0
    %533 = vmatprep.subr.mxu0 0.0
    %534 = vmatpush2.msra.mxu0 0.0
    %535 = vmatprep.subr.mxu0 0.0
    %536 = vmatpush2.msra.mxu0 0.0
    %537 = vmatprep.subr.mxu0 0.0
    %538 = vmatpush2.msra.mxu0 0.0
    %539 = vmatprep.subr.mxu0 0.0
    %540 = vmatpush2.msra.mxu0 0.0
    %541 = vmatprep.mubr.f32.mxu0 0.0
    %542 = vmatmul.mubr.f32.gmra.mxu0 %v454
    %v543 = vpop.f32.mrf.mxu0
    %v544 = vadd.f32 0.0, %v543
    %v545 = vpop.f32.mrf.mxu0
    %546 = vmatprep.mubr.f32.mxu0 0.0
    %547 = vmatmul.mubr.f32.gmra.mxu0 %v457
    %v548 = vpop.f32.mrf.mxu0
    %v549 = vadd.f32 0.0, %v548
    %v550 = vpop.f32.mrf.mxu0
    %551 = vmatprep.mubr.f32.mxu0 0.0
    %552 = vmatmul.mubr.f32.gmra.mxu0 %v460
    %v553 = vpop.f32.mrf.mxu0
    %v554 = vadd.f32 0.0, %v553
    %v555 = vpop.f32.mrf.mxu0
    %556 = vmatprep.mubr.f32.mxu0 0.0
    %557 = vmatmul.mubr.f32.gmra.mxu0 %v463
    %v558 = vpop.f32.mrf.mxu0
    %v559 = vadd.f32 0.0, %v558
    %v560 = vpop.f32.mrf.mxu0
    %561 = vmatprep.mubr.f32.mxu0 0.0
    %562 = vmatmul.mubr.f32.gmra.mxu0 %v466
    %v563 = vpop.f32.mrf.mxu0
    %v564 = vadd.f32 0.0, %v563
    %v565 = vpop.f32.mrf.mxu0
    %566 = vmatprep.mubr.f32.mxu0 0.0
    %567 = vmatmul.mubr.f32.gmra.mxu0 %v469
    %v568 = vpop.f32.mrf.mxu0
    %v569 = vadd.f32 0.0, %v568
    %v570 = vpop.f32.mrf.mxu0
    %571 = vmatprep.mubr.f32.mxu0 0.0
    %572 = vmatmul.mubr.f32.gmra.mxu0 %v472
    %v573 = vpop.f32.mrf.mxu0
    %v574 = vadd.f32 0.0, %v573
    %v575 = vpop.f32.mrf.mxu0
    %576 = vmatprep.mubr.f32.mxu0 0.0
    %577 = vmatmul.mubr.f32.gmra.mxu0 %v475
    %v578 = vpop.f32.mrf.mxu0
    %v579 = vadd.f32 0.0, %v578
    %v580 = vpop.f32.mrf.mxu0
    %581 = vdwg.mxu0
    %v582 = vrcp.pop %v431
    %v583 = vrcp.pop %v434
    %v584 = vrcp.pop %v437
    %v585 = vrcp.pop %v440
    %v586 = vrcp.pop %v443
    %v587 = vrcp.pop %v446
    %v588 = vrcp.pop %v449
    %v589 = vrcp.pop %v452
    %v590 = vmul.f32 %v431, %v582
    %v591 = vmul.f32 %v434, %v583
    %v592 = vmul.f32 %v437, %v584
    %v593 = vmul.f32 %v440, %v585
    %v594 = vmul.f32 %v443, %v586
    %v595 = vmul.f32 %v446, %v587
    %v596 = vmul.f32 %v449, %v588
    %v597 = vmul.f32 %v452, %v589
    %v598 = vsub.f32 2.0, %v590
    %v599 = vsub.f32 2.0, %v591
    %v600 = vsub.f32 2.0, %v592
    %v601 = vsub.f32 2.0, %v593
    %v602 = vsub.f32 2.0, %v594
    %v603 = vsub.f32 2.0, %v595
    %v604 = vsub.f32 2.0, %v596
    %v605 = vsub.f32 2.0, %v597
    %v606 = vmul.f32 %v582, %v598
    %v607 = vmul.f32 %v583, %v599
    %v608 = vmul.f32 %v584, %v600
    %v609 = vmul.f32 %v585, %v601
    %v610 = vmul.f32 %v586, %v602
    %v611 = vmul.f32 %v587, %v603
    %v612 = vmul.f32 %v588, %v604
    %v613 = vmul.f32 %v589, %v605
    %v614 = vmul.f32 %v544, %v606
    %v615 = vmul.f32 %v549, %v607
    %v616 = vmul.f32 %v554, %v608
    %v617 = vmul.f32 %v559, %v609
    %v618 = vmul.f32 %v564, %v610
    %v619 = vmul.f32 %v569, %v611
    %v620 = vmul.f32 %v574, %v612
    %v621 = vmul.f32 %v579, %v613
    %622 = vset.pattern.permute.xlu0 43
    %623 = vperm.xlu0 %622, %v186
    %v624 = vpop.permute.xlu0 %623
    %626 = vset.pattern.permute.xlu0 43
    %627 = vperm.xlu0 %626, %v191
    %v628 = vpop.permute.xlu0 %627
    %630 = vset.pattern.permute.xlu0 43
    %631 = vperm.xlu0 %630, %v196
    %v632 = vpop.permute.xlu0 %631
    %634 = vset.pattern.permute.xlu0 43
    %635 = vperm.xlu0 %634, %v201
    %v636 = vpop.permute.xlu0 %635
    %638 = vset.pattern.permute.xlu0 43
    %639 = vperm.xlu0 %638, %v206
    %v640 = vpop.permute.xlu0 %639
    %642 = vset.pattern.permute.xlu0 43
    %643 = vperm.xlu0 %642, %v211
    %v644 = vpop.permute.xlu0 %643
    %646 = vset.pattern.permute.xlu0 43
    %647 = vperm.xlu0 %646, %v216
    %v648 = vpop.permute.xlu0 %647
    %650 = vset.pattern.permute.xlu0 43
    %651 = vperm.xlu0 %650, %v221
    %v652 = vpop.permute.xlu0 %651
    %v654 = vlaneseq
    %v655 = vshrl.u32 %v654, 7
    %v656 = vsub.s32 1, %v655
    %v657 = vrot.slane %v288, %v656
    %v658 = vadd.f32 %v624, %v657
    %v659 = vadd.f32 %v628, %v657
    %v660 = vadd.f32 %v632, %v657
    %v661 = vadd.f32 %v636, %v657
    %v662 = vadd.f32 %v640, %v657
    %v663 = vadd.f32 %v644, %v657
    %v664 = vadd.f32 %v648, %v657
    %v665 = vadd.f32 %v652, %v657
    %vm666 = vcmp.gt.f32.partialorder %v658, 0.0
    %vm667 = vcmp.gt.f32.partialorder %v659, 0.0
    %vm668 = vcmp.gt.f32.partialorder %v660, 0.0
    %vm669 = vcmp.gt.f32.partialorder %v661, 0.0
    %vm670 = vcmp.gt.f32.partialorder %v662, 0.0
    %vm671 = vcmp.gt.f32.partialorder %v663, 0.0
    %vm672 = vcmp.gt.f32.partialorder %v664, 0.0
    %vm673 = vcmp.gt.f32.partialorder %v665, 0.0
    %v674 = vmul.f32 %v658, 0.2
    %v675 = vmul.f32 %v659, 0.2
    %v676 = vmul.f32 %v660, 0.2
    %v677 = vmul.f32 %v661, 0.2
    %v678 = vmul.f32 %v662, 0.2
    %v679 = vmul.f32 %v663, 0.2
    %v680 = vmul.f32 %v664, 0.2
    %v681 = vmul.f32 %v665, 0.2
    %v682 = vsel %vm666, %v658, %v674
    %v683 = vsel %vm667, %v659, %v675
    %v684 = vsel %vm668, %v660, %v676
    %v685 = vsel %vm669, %v661, %v677
    %v686 = vsel %vm670, %v662, %v678
    %v687 = vsel %vm671, %v663, %v679
    %v688 = vsel %vm672, %v664, %v680
    %v689 = vsel %vm673, %v665, %v681
    %v690 = vadd.f32 %v682, %v232
    %v691 = vadd.f32 %v683, %v233
    %v692 = vadd.f32 %v684, %v234
    %v693 = vadd.f32 %v685, %v235
    %v694 = vadd.f32 %v686, %v236
    %v695 = vadd.f32 %v687, %v237
    %v696 = vadd.f32 %v688, %v238
    %v697 = vadd.f32 %v689, %v239
    %v698 = vsel %vm380, %v690, -inf
    %699 = vmax.xlane.f32.xlu0 %v698
    %v700 = vpop.xlane.xlu0 %699
    %v701 = vsel %vm380, %v691, -inf
    %702 = vmax.xlane.f32.xlu0 %v701
    %v703 = vpop.xlane.xlu0 %702
    %v704 = vsel %vm380, %v692, -inf
    %705 = vmax.xlane.f32.xlu0 %v704
    %v706 = vpop.xlane.xlu0 %705
    %v707 = vsel %vm380, %v693, -inf
    %708 = vmax.xlane.f32.xlu0 %v707
    %v709 = vpop.xlane.xlu0 %708
    %v710 = vsel %vm380, %v694, -inf
    %711 = vmax.xlane.f32.xlu0 %v710
    %v712 = vpop.xlane.xlu0 %711
    %v713 = vsel %vm380, %v695, -inf
    %714 = vmax.xlane.f32.xlu0 %v713
    %v715 = vpop.xlane.xlu0 %714
    %v716 = vsel %vm380, %v696, -inf
    %717 = vmax.xlane.f32.xlu0 %v716
    %v718 = vpop.xlane.xlu0 %717
    %v719 = vsel %vm380, %v697, -inf
    %720 = vmax.xlane.f32.xlu0 %v719
    %v721 = vpop.xlane.xlu0 %720
    %v722 = vsub.f32 %v690, %v700
    %v723 = vsub.f32 %v691, %v703
    %v724 = vsub.f32 %v692, %v706
    %v725 = vsub.f32 %v693, %v709
    %v726 = vsub.f32 %v694, %v712
    %v727 = vsub.f32 %v695, %v715
    %v728 = vsub.f32 %v696, %v718
    %v729 = vsub.f32 %v697, %v721
    %v730 = vmul.f32 %v722, 1.442695
    %v731 = vpow.pop %v730
    %v732 = vmul.f32 %v723, 1.442695
    %v733 = vpow.pop %v732
    %v734 = vmul.f32 %v724, 1.442695
    %v735 = vpow.pop %v734
    %v736 = vmul.f32 %v725, 1.442695
    %v737 = vpow.pop %v736
    %v738 = vmul.f32 %v726, 1.442695
    %v739 = vpow.pop %v738
    %v740 = vmul.f32 %v727, 1.442695
    %v741 = vpow.pop %v740
    %v742 = vmul.f32 %v728, 1.442695
    %v743 = vpow.pop %v742
    %v744 = vmul.f32 %v729, 1.442695
    %v745 = vpow.pop %v744
    %v746 = vsel %vm380, %v731, 0.0
    %747 = vadd.xlane.f32.xlu0 %v746
    %v748 = vpop.xlane.xlu0 %747
    %v749 = vsel %vm380, %v733, 0.0
    %750 = vadd.xlane.f32.xlu0 %v749
    %v751 = vpop.xlane.xlu0 %750
    %v752 = vsel %vm380, %v735, 0.0
    %753 = vadd.xlane.f32.xlu0 %v752
    %v754 = vpop.xlane.xlu0 %753
    %v755 = vsel %vm380, %v737, 0.0
    %756 = vadd.xlane.f32.xlu0 %v755
    %v757 = vpop.xlane.xlu0 %756
    %v758 = vsel %vm380, %v739, 0.0
    %759 = vadd.xlane.f32.xlu0 %v758
    %v760 = vpop.xlane.xlu0 %759
    %v761 = vsel %vm380, %v741, 0.0
    %762 = vadd.xlane.f32.xlu0 %v761
    %v763 = vpop.xlane.xlu0 %762
    %v764 = vsel %vm380, %v743, 0.0
    %765 = vadd.xlane.f32.xlu0 %v764
    %v766 = vpop.xlane.xlu0 %765
    %v767 = vsel %vm380, %v745, 0.0
    %768 = vadd.xlane.f32.xlu0 %v767
    %v769 = vpop.xlane.xlu0 %768
    %770 = vrot.lane.b32.xlu0 %v186, 64
    %v771 = vpop.permute.xlu0 %770
    %772 = vrot.lane.b32.xlu0 %v191, 64
    %v773 = vpop.permute.xlu0 %772
    %774 = vrot.lane.b32.xlu0 %v196, 64
    %v775 = vpop.permute.xlu0 %774
    %776 = vrot.lane.b32.xlu0 %v201, 64
    %v777 = vpop.permute.xlu0 %776
    %778 = vrot.lane.b32.xlu0 %v206, 64
    %v779 = vpop.permute.xlu0 %778
    %780 = vrot.lane.b32.xlu0 %v211, 64
    %v781 = vpop.permute.xlu0 %780
    %782 = vrot.lane.b32.xlu0 %v216, 64
    %v783 = vpop.permute.xlu0 %782
    %784 = vrot.lane.b32.xlu0 %v221, 64
    %v785 = vpop.permute.xlu0 %784
    %v795 = vsel %vm380, %v731, 0
    %v798 = vsel %vm380, %v733, 0
    %v801 = vsel %vm380, %v735, 0
    %v804 = vsel %vm380, %v737, 0
    %v807 = vsel %vm380, %v739, 0
    %v810 = vsel %vm380, %v741, 0
    %v813 = vsel %vm380, %v743, 0
    %v816 = vsel %vm380, %v745, 0
    %818 = vmatprep.subr.mxu0 0.0
    %819 = vmatpush1.msra.mxu0 0.0
    %820 = vmatprep.subr.mxu0 0.0
    %821 = vmatpush1.msra.mxu0 0.0
    %822 = vmatprep.subr.mxu0 0.0
    %823 = vmatpush1.msra.mxu0 0.0
    %824 = vmatprep.subr.mxu0 0.0
    %825 = vmatpush1.msra.mxu0 0.0
    %826 = vmatprep.subr.mxu0 0.0
    %827 = vmatpush1.msra.mxu0 0.0
    %828 = vmatprep.subr.mxu0 0.0
    %829 = vmatpush1.msra.mxu0 0.0
    %830 = vmatprep.subr.mxu0 0.0
    %831 = vmatpush1.msra.mxu0 0.0
    %832 = vmatprep.subr.mxu0 0.0
    %833 = vmatpush1.msra.mxu0 0.0
    %834 = vmatprep.subr.mxu0 0.0
    %835 = vmatpush1.msra.mxu0 %v785
    %836 = vmatprep.subr.mxu0 0.0
    %837 = vmatpush1.msra.mxu0 %v783
    %838 = vmatprep.subr.mxu0 0.0
    %839 = vmatpush1.msra.mxu0 %v781
    %840 = vmatprep.subr.mxu0 0.0
    %841 = vmatpush1.msra.mxu0 %v779
    %842 = vmatprep.subr.mxu0 0.0
    %843 = vmatpush1.msra.mxu0 %v777
    %844 = vmatprep.subr.mxu0 0.0
    %845 = vmatpush1.msra.mxu0 %v775
    %846 = vmatprep.subr.mxu0 0.0
    %847 = vmatpush1.msra.mxu0 %v773
    %848 = vmatprep.subr.mxu0 0.0
    %849 = vmatpush1.msra.mxu0 %v771
    %850 = vmatprep.subr.mxu0 0.0
    %851 = vmatpush2.msra.mxu0 0.0
    %852 = vmatprep.subr.mxu0 0.0
    %853 = vmatpush2.msra.mxu0 0.0
    %854 = vmatprep.subr.mxu0 0.0
    %855 = vmatpush2.msra.mxu0 0.0
    %856 = vmatprep.subr.mxu0 0.0
    %857 = vmatpush2.msra.mxu0 0.0
    %858 = vmatprep.subr.mxu0 0.0
    %859 = vmatpush2.msra.mxu0 0.0
    %860 = vmatprep.subr.mxu0 0.0
    %861 = vmatpush2.msra.mxu0 0.0
    %862 = vmatprep.subr.mxu0 0.0
    %863 = vmatpush2.msra.mxu0 0.0
    %864 = vmatprep.subr.mxu0 0.0
    %865 = vmatpush2.msra.mxu0 0.0
    %866 = vmatprep.subr.mxu0 0.0
    %867 = vmatpush2.msra.mxu0 0.0
    %868 = vmatprep.subr.mxu0 0.0
    %869 = vmatpush2.msra.mxu0 0.0
    %870 = vmatprep.subr.mxu0 0.0
    %871 = vmatpush2.msra.mxu0 0.0
    %872 = vmatprep.subr.mxu0 0.0
    %873 = vmatpush2.msra.mxu0 0.0
    %874 = vmatprep.subr.mxu0 0.0
    %875 = vmatpush2.msra.mxu0 0.0
    %876 = vmatprep.subr.mxu0 0.0
    %877 = vmatpush2.msra.mxu0 0.0
    %878 = vmatprep.subr.mxu0 0.0
    %879 = vmatpush2.msra.mxu0 0.0
    %880 = vmatprep.subr.mxu0 0.0
    %881 = vmatpush2.msra.mxu0 0.0
    %882 = vmatprep.mubr.f32.mxu0 0.0
    %883 = vmatmul.mubr.f32.gmra.mxu0 %v795
    %v884 = vpop.f32.mrf.mxu0
    %v885 = vadd.f32 0.0, %v884
    %v886 = vpop.f32.mrf.mxu0
    %887 = vmatprep.mubr.f32.mxu0 0.0
    %888 = vmatmul.mubr.f32.gmra.mxu0 %v798
    %v889 = vpop.f32.mrf.mxu0
    %v890 = vadd.f32 0.0, %v889
    %v891 = vpop.f32.mrf.mxu0
    %892 = vmatprep.mubr.f32.mxu0 0.0
    %893 = vmatmul.mubr.f32.gmra.mxu0 %v801
    %v894 = vpop.f32.mrf.mxu0
    %v895 = vadd.f32 0.0, %v894
    %v896 = vpop.f32.mrf.mxu0
    %897 = vmatprep.mubr.f32.mxu0 0.0
    %898 = vmatmul.mubr.f32.gmra.mxu0 %v804
    %v899 = vpop.f32.mrf.mxu0
    %v900 = vadd.f32 0.0, %v899
    %v901 = vpop.f32.mrf.mxu0
    %902 = vmatprep.mubr.f32.mxu0 0.0
    %903 = vmatmul.mubr.f32.gmra.mxu0 %v807
    %v904 = vpop.f32.mrf.mxu0
    %v905 = vadd.f32 0.0, %v904
    %v906 = vpop.f32.mrf.mxu0
    %907 = vmatprep.mubr.f32.mxu0 0.0
    %908 = vmatmul.mubr.f32.gmra.mxu0 %v810
    %v909 = vpop.f32.mrf.mxu0
    %v910 = vadd.f32 0.0, %v909
    %v911 = vpop.f32.mrf.mxu0
    %912 = vmatprep.mubr.f32.mxu0 0.0
    %913 = vmatmul.mubr.f32.gmra.mxu0 %v813
    %v914 = vpop.f32.mrf.mxu0
    %v915 = vadd.f32 0.0, %v914
    %v916 = vpop.f32.mrf.mxu0
    %917 = vmatprep.mubr.f32.mxu0 0.0
    %918 = vmatmul.mubr.f32.gmra.mxu0 %v816
    %v919 = vpop.f32.mrf.mxu0
    %v920 = vadd.f32 0.0, %v919
    %v921 = vpop.f32.mrf.mxu0
    %922 = vdwg.mxu0
    %v923 = vrcp.pop %v748
    %v924 = vrcp.pop %v751
    %v925 = vrcp.pop %v754
    %v926 = vrcp.pop %v757
    %v927 = vrcp.pop %v760
    %v928 = vrcp.pop %v763
    %v929 = vrcp.pop %v766
    %v930 = vrcp.pop %v769
    %v931 = vmul.f32 %v748, %v923
    %v932 = vmul.f32 %v751, %v924
    %v933 = vmul.f32 %v754, %v925
    %v934 = vmul.f32 %v757, %v926
    %v935 = vmul.f32 %v760, %v927
    %v936 = vmul.f32 %v763, %v928
    %v937 = vmul.f32 %v766, %v929
    %v938 = vmul.f32 %v769, %v930
    %v939 = vsub.f32 2.0, %v931
    %v940 = vsub.f32 2.0, %v932
    %v941 = vsub.f32 2.0, %v933
    %v942 = vsub.f32 2.0, %v934
    %v943 = vsub.f32 2.0, %v935
    %v944 = vsub.f32 2.0, %v936
    %v945 = vsub.f32 2.0, %v937
    %v946 = vsub.f32 2.0, %v938
    %v947 = vmul.f32 %v923, %v939
    %v948 = vmul.f32 %v924, %v940
    %v949 = vmul.f32 %v925, %v941
    %v950 = vmul.f32 %v926, %v942
    %v951 = vmul.f32 %v927, %v943
    %v952 = vmul.f32 %v928, %v944
    %v953 = vmul.f32 %v929, %v945
    %v954 = vmul.f32 %v930, %v946
    %v955 = vmul.f32 %v885, %v947
    %v956 = vmul.f32 %v890, %v948
    %v957 = vmul.f32 %v895, %v949
    %v958 = vmul.f32 %v900, %v950
    %v959 = vmul.f32 %v905, %v951
    %v960 = vmul.f32 %v910, %v952
    %v961 = vmul.f32 %v915, %v953
    %v962 = vmul.f32 %v920, %v954
    %971 = vrot.lane.b32.xlu0 %v955, 64
    %v972 = vpop.permute.xlu0 %971
    %973 = vrot.lane.b32.xlu0 %v956, 64
    %v974 = vpop.permute.xlu0 %973
    %975 = vrot.lane.b32.xlu0 %v957, 64
    %v976 = vpop.permute.xlu0 %975
    %977 = vrot.lane.b32.xlu0 %v958, 64
    %v978 = vpop.permute.xlu0 %977
    %979 = vrot.lane.b32.xlu0 %v959, 64
    %v980 = vpop.permute.xlu0 %979
    %981 = vrot.lane.b32.xlu0 %v960, 64
    %v982 = vpop.permute.xlu0 %981
    %983 = vrot.lane.b32.xlu0 %v961, 64
    %v984 = vpop.permute.xlu0 %983
    %985 = vrot.lane.b32.xlu0 %v962, 64
    %v986 = vpop.permute.xlu0 %985
    %v995 = vsel %vm380, %v614, %v972
    %v996 = vsel %vm380, %v615, %v974
    %v997 = vsel %vm380, %v616, %v976
    %v998 = vsel %vm380, %v617, %v978
    %v999 = vsel %vm380, %v618, %v980
    %v1000 = vsel %vm380, %v619, %v982
    %v1001 = vsel %vm380, %v620, %v984
    %v1002 = vsel %vm380, %v621, %v986
    %v1003 = vld [vmem:[%s3] sm:$0x1]
    %v1005 = vlaneseq
    %v1006 = vshrl.u32 %v1005, 7
    %v1007 = vsub.s32 0, %v1006
    %v1008 = vrot.slane %v1003, %v1007
    %v1010 = vadd.f32 %v995, %v1008
    %v1011 = vadd.f32 %v996, %v1008
    %v1012 = vadd.f32 %v997, %v1008
    %v1013 = vadd.f32 %v998, %v1008
    %v1014 = vadd.f32 %v999, %v1008
    %v1015 = vadd.f32 %v1000, %v1008
    %v1016 = vadd.f32 %v1001, %v1008
    %v1017 = vadd.f32 %v1002, %v1008
    %1018 = vst [vmem:[#allocation2] sm:$0xff] %v1010
    %1019 = vst [vmem:[#allocation2 + $0x8] sm:$0xff] %v1011
    %1020 = vst [vmem:[#allocation2 + $0x10] sm:$0xff] %v1012
    %1021 = vst [vmem:[#allocation2 + $0x18] sm:$0xff] %v1013
    %1022 = vst [vmem:[#allocation2 + $0x20] sm:$0xff] %v1014
    %1023 = vst [vmem:[#allocation2 + $0x28] sm:$0xff] %v1015
    %1024 = vst [vmem:[#allocation2 + $0x30] sm:$0xff] %v1016
    %1025 = vst [vmem:[#allocation2 + $0x38] sm:$0xff] %v1017
    // Predicated region
    $region18: #{tpu_custom_call.1} parent=1 // pred_check
      _
    $region19: #{tpu_custom_call.1} parent=1 // pred_check_branch
      %1027 = sbr.rel (0) target = $region21
    $region20: #{tpu_custom_call.1} parent=1 // pred_region
      %s1029 = ssub.s32 1024, 1024
      %1030 = vsyncadd [#allocation3], %s1029
      %s1031 = sshll.u32 [#allocation2], 4
      %s1032 = int_to_ptr.vmem [resolvable:$true] %s1031
      %1037 = dma.vmem_to_hbm [thread:$0]  %s1032, 1024, %s4, [#allocation3], 128, 128, 8
    $region21: #{tpu_custom_call.1} parent=1 // pred_fallthru
      _
    // Predicated region
    $region22: #{tpu_custom_call.1} parent=1 // pred_check
      _
    $region23: #{tpu_custom_call.1} parent=1 // pred_check_branch
      %1039 = sbr.rel (0) target = $region25
    $region24: #{tpu_custom_call.1} parent=1 // pred_region
      %1040 = dma.done [#allocation3], 1024
    $region25: #{tpu_custom_call.1} parent=1 // pred_fallthru
      _
    %1041 = vsyncpa [#allocation3], 1

</llo_original>
